<compile_context>
chip_gen: v6e
topology: v6e:2x2x1
jax: 0.10.0
libtpu: 0.0.40
codegen_flags: <defaults>
</compile_context>

<pallas_src>
import functools

import jax
import jax.numpy as jnp
from jax.experimental import pallas as pl
from jax.experimental.pallas import tpu as pltpu


def _swp_kernel(*refs, ws, nw, C, qw, rw, fused):
    """One (batch b, output window-row i) grid step.

    fused=True : refs = (x_ref, o_ref); x_ref is (1, ws, nw, ws*C) holding the
                 ws row-aligned source rows of this output window-row.
    fused=False: refs = (x_ref_0..x_ref_{ws-1}, o_ref); x_ref_wi is
                 (1, 1, nw, ws*C) holding source image row
                 (i*ws + wi + shift) % H viewed as (nw, ws*C).
    o_ref: (1, 1, nw, ws, ws*C) = out[b, i] in lane-dense layout.
    """
    o_ref = refs[-1]
    x_refs = refs[:-1]
    for wi in range(ws):
        src = x_refs[0][0, wi] if fused else x_refs[wi][0, 0]      # (nw, ws*C)
        # W-roll by -shift with shift = qw*ws + rw on the windowed view:
        # rotate whole window-columns by qw (sublane rotation) ...
        a = src if qw == 0 else jnp.concatenate([src[qw:], src[:qw]], axis=0)
        if rw == 0:
            rowo = a
        else:
            # ... plus an rw-pixel (rw*C-lane) splice from the next window-col.
            b = jnp.concatenate([a[1:], a[:1]], axis=0) if nw > 1 else a
            rowo = jnp.concatenate([a[:, rw * C:], b[:, :rw * C]], axis=1)
        # Lane-dense store: full (nw, ws*C) slab for within-window row wi.
        o_ref[0, 0, :, wi, :] = rowo


def shifted_window_partition(x, window_size: int, shift_size: int):
    """x: (B, H, W, *embed) -> (B, H//ws, W//ws, ws, ws, *embed)."""
    ws = int(window_size)
    B, H, W = x.shape[:3]
    embed = x.shape[3:]
    assert H % ws == 0 and W % ws == 0, "H, W must be multiples of window_size"
    C = 1
    for d in embed:
        C *= int(d)
    nh, nw = H // ws, W // ws

    sh = shift_size % H            # row shift
    sw = shift_size % W            # column shift
    qw, rw = sw // ws, sw % ws     # column shift in (window-columns, pixels)
    qh = sh // ws
    fused = (sh % ws == 0)         # row shift lands on window-row boundaries

    # Free reshape: rows arrive in the kernel already as (nw, ws*C) slabs.
    xv = x.reshape(B, H, nw, ws * C)

    if fused:
        # One contiguous ws-row DMA per grid step; H-roll is a whole
        # window-row rotation folded into the block index.
        in_specs = [pl.BlockSpec((1, ws, nw, ws * C),
                                 lambda b, i: (b, (i + qh) % nh, 0, 0))]
        operands = (xv,)
    else:
        # One BlockSpec per within-window row; block size 1 along H so the
        # returned index is the source row directly (handles wrap-around).
        def row_spec(wi):
            return pl.BlockSpec(
                (1, 1, nw, ws * C),
                lambda b, i, wi=wi: (b, (i * ws + wi + sh) % H, 0, 0),
            )
        in_specs = [row_spec(wi) for wi in range(ws)]
        operands = (xv,) * ws

    kernel = functools.partial(
        _swp_kernel, ws=ws, nw=nw, C=C, qw=qw, rw=rw, fused=fused
    )

    out = pl.pallas_call(
        kernel,
        out_shape=jax.ShapeDtypeStruct((B, nh, nw, ws, ws * C), x.dtype),
        grid=(B, nh),
        in_specs=in_specs,
        out_specs=pl.BlockSpec(
            (1, 1, nw, ws, ws * C), lambda b, i: (b, i, 0, 0, 0)
        ),
        compiler_params=pltpu.CompilerParams(
            dimension_semantics=("parallel", "parallel")
        ),
    )(*operands)

    # Free reshape back to the module's output layout.
    return out.reshape((B, nh, nw, ws, ws) + embed)


def _reference(x, window_size: int, shift_size: int):
    """Pure-JAX reference matching the PyTorch module semantics."""
    ws = window_size
    B, H, W = x.shape[:3]
    embed = x.shape[3:]
    x_shifted = jnp.roll(x, shift=(-shift_size, -shift_size), axis=(1, 2))
    xr = x_shifted.reshape((B, H // ws, ws, W // ws, ws) + embed)
    perm = (0, 1, 3, 2, 4) + tuple(range(5, 5 + len(embed)))
    return jnp.transpose(xr, perm)


if __name__ == "__main__":
    # Small deterministic example: B=2, H=W=16, C=32, window_size=4.
    # (Module has no learnable parameters -- window_size / shift_size are config.)
    window_size = 4
    key = jax.random.PRNGKey(0)
    x = jax.random.normal(key, (2, 16, 16, 32), dtype=jnp.float32)

    # shift=0 / 4 exercise the fused single-DMA path (row shift on window
    # boundary); shift=2 is the typical Swin ws//2 case; shift=7 exercises the
    # whole-window-column rotation + splice path.
    for shift_size in (0, 2, 4, 7):
        out = jax.block_until_ready(
            shifted_window_partition(x, window_size, shift_size)
        )
        ref = _reference(x, window_size, shift_size)
        assert out.shape == ref.shape, (out.shape, ref.shape)
        assert jnp.allclose(out, ref), f"mismatch vs reference (shift={shift_size})"

    print("KERNEL_OK")
</pallas_src>

<mosaic_0001>
module attributes {stable_mosaic.version = 11 : i64} {
  func.func @_swp_kernel(%arg0: i32, %arg1: i32, %arg2: memref<1x4x4x128xf32, #tpu.memory_space<vmem>>, %arg3: memref<1x1x4x4x128xf32, #tpu.memory_space<vmem>>) attributes {dimension_semantics = [#tpu.dimension_semantics<parallel>, #tpu.dimension_semantics<parallel>], iteration_bounds = array<i64: 2, 4>, scalar_prefetch = 0 : i64, scratch_operands = 0 : i64, tpu.core_type = #tpu.core_type<tc>, window_params = [{transform_indices = @transform_0, window_bounds = array<i64: 1, 4, 4, 128>}, {transform_indices = @transform_1, window_bounds = array<i64: 1, 1, 4, 4, 128>}]} {
    %c0 = arith.constant 0 : index
    %c0_0 = arith.constant 0 : index
    %c0_1 = arith.constant 0 : index
    %c0_2 = arith.constant 0 : index
    %0 = vector.load %arg2[%c0, %c0_0, %c0_1, %c0_2] : memref<1x4x4x128xf32, #tpu.memory_space<vmem>>, vector<1x1x4x128xf32>
    %1 = vector.shape_cast %0 : vector<1x1x4x128xf32> to vector<4x128xf32>
    %c0_3 = arith.constant 0 : index
    %c0_4 = arith.constant 0 : index
    %c0_5 = arith.constant 0 : index
    %c0_6 = arith.constant 0 : index
    %c0_7 = arith.constant 0 : index
    %2 = vector.load %arg3[%c0_3, %c0_4, %c0_5, %c0_6, %c0_7] : memref<1x1x4x4x128xf32, #tpu.memory_space<vmem>>, vector<1x1x4x1x128xf32>
    %3 = vector.shape_cast %2 : vector<1x1x4x1x128xf32> to vector<4x128xf32>
    %4 = vector.shape_cast %1 : vector<4x128xf32> to vector<1x1x4x1x128xf32>
    tpu.vector_store %arg3[%c0_3, %c0_4, %c0_5, %c0_6, %c0_7], %4 {strides = array<i32>} : memref<1x1x4x4x128xf32, #tpu.memory_space<vmem>>, vector<1x1x4x1x128xf32>,
    %c0_8 = arith.constant 0 : index
    %c1 = arith.constant 1 : index
    %c0_9 = arith.constant 0 : index
    %c0_10 = arith.constant 0 : index
    %5 = vector.load %arg2[%c0_8, %c1, %c0_9, %c0_10] : memref<1x4x4x128xf32, #tpu.memory_space<vmem>>, vector<1x1x4x128xf32>
    %6 = vector.shape_cast %5 : vector<1x1x4x128xf32> to vector<4x128xf32>
    %c0_11 = arith.constant 0 : index
    %c0_12 = arith.constant 0 : index
    %c0_13 = arith.constant 0 : index
    %c1_14 = arith.constant 1 : index
    %c0_15 = arith.constant 0 : index
    %7 = vector.load %arg3[%c0_11, %c0_12, %c0_13, %c1_14, %c0_15] : memref<1x1x4x4x128xf32, #tpu.memory_space<vmem>>, vector<1x1x4x1x128xf32>
    %8 = vector.shape_cast %7 : vector<1x1x4x1x128xf32> to vector<4x128xf32>
    %9 = vector.shape_cast %6 : vector<4x128xf32> to vector<1x1x4x1x128xf32>
    tpu.vector_store %arg3[%c0_11, %c0_12, %c0_13, %c1_14, %c0_15], %9 {strides = array<i32>} : memref<1x1x4x4x128xf32, #tpu.memory_space<vmem>>, vector<1x1x4x1x128xf32>,
    %c0_16 = arith.constant 0 : index
    %c2 = arith.constant 2 : index
    %c0_17 = arith.constant 0 : index
    %c0_18 = arith.constant 0 : index
    %10 = vector.load %arg2[%c0_16, %c2, %c0_17, %c0_18] : memref<1x4x4x128xf32, #tpu.memory_space<vmem>>, vector<1x1x4x128xf32>
    %11 = vector.shape_cast %10 : vector<1x1x4x128xf32> to vector<4x128xf32>
    %c0_19 = arith.constant 0 : index
    %c0_20 = arith.constant 0 : index
    %c0_21 = arith.constant 0 : index
    %c2_22 = arith.constant 2 : index
    %c0_23 = arith.constant 0 : index
    %12 = vector.load %arg3[%c0_19, %c0_20, %c0_21, %c2_22, %c0_23] : memref<1x1x4x4x128xf32, #tpu.memory_space<vmem>>, vector<1x1x4x1x128xf32>
    %13 = vector.shape_cast %12 : vector<1x1x4x1x128xf32> to vector<4x128xf32>
    %14 = vector.shape_cast %11 : vector<4x128xf32> to vector<1x1x4x1x128xf32>
    tpu.vector_store %arg3[%c0_19, %c0_20, %c0_21, %c2_22, %c0_23], %14 {strides = array<i32>} : memref<1x1x4x4x128xf32, #tpu.memory_space<vmem>>, vector<1x1x4x1x128xf32>,
    %c0_24 = arith.constant 0 : index
    %c3 = arith.constant 3 : index
    %c0_25 = arith.constant 0 : index
    %c0_26 = arith.constant 0 : index
    %15 = vector.load %arg2[%c0_24, %c3, %c0_25, %c0_26] : memref<1x4x4x128xf32, #tpu.memory_space<vmem>>, vector<1x1x4x128xf32>
    %16 = vector.shape_cast %15 : vector<1x1x4x128xf32> to vector<4x128xf32>
    %c0_27 = arith.constant 0 : index
    %c0_28 = arith.constant 0 : index
    %c0_29 = arith.constant 0 : index
    %c3_30 = arith.constant 3 : index
    %c0_31 = arith.constant 0 : index
    %17 = vector.load %arg3[%c0_27, %c0_28, %c0_29, %c3_30, %c0_31] : memref<1x1x4x4x128xf32, #tpu.memory_space<vmem>>, vector<1x1x4x1x128xf32>
    %18 = vector.shape_cast %17 : vector<1x1x4x1x128xf32> to vector<4x128xf32>
    %19 = vector.shape_cast %16 : vector<4x128xf32> to vector<1x1x4x1x128xf32>
    tpu.vector_store %arg3[%c0_27, %c0_28, %c0_29, %c3_30, %c0_31], %19 {strides = array<i32>} : memref<1x1x4x4x128xf32, #tpu.memory_space<vmem>>, vector<1x1x4x1x128xf32>,
    return
  }
  func.func @transform_0(%arg0: i32, %arg1: i32) -> (i32, i32, i32, i32) {
    %c0_i32 = arith.constant 0 : i32
    %0 = arith.addi %arg1, %c0_i32 : i32
    %c4_i32 = arith.constant 4 : i32
    %c0_i32_0 = arith.constant 0 : i32
    %1 = arith.cmpi eq, %c4_i32, %c0_i32_0 : i32
    %c1_i32 = arith.constant 1 : i32
    %2 = arith.select %1, %c1_i32, %c4_i32 : i32
    %3 = arith.remsi %0, %2 : i32
    %c0_i32_1 = arith.constant 0 : i32
    %4 = arith.cmpi ne, %3, %c0_i32_1 : i32
    %c0_i32_2 = arith.constant 0 : i32
    %5 = arith.cmpi slt, %3, %c0_i32_2 : i32
    %c0_i32_3 = arith.constant 0 : i32
    %6 = arith.cmpi slt, %2, %c0_i32_3 : i32
    %7 = arith.xori %5, %6 : i1
    %8 = arith.andi %7, %4 : i1
    %9 = arith.addi %3, %2 : i32
    %10 = arith.select %8, %9, %3 : i32
    %c0_i32_4 = arith.constant 0 : i32
    %c0_i32_5 = arith.constant 0 : i32
    %c0_i32_6 = arith.constant 0 : i32
    return %arg0, %10, %c0_i32_4, %c0_i32_5 : i32, i32, i32, i32
  }
  func.func @transform_1(%arg0: i32, %arg1: i32) -> (i32, i32, i32, i32, i32) {
    %c0_i32 = arith.constant 0 : i32
    %c0_i32_0 = arith.constant 0 : i32
    %c0_i32_1 = arith.constant 0 : i32
    %c0_i32_2 = arith.constant 0 : i32
    return %arg0, %arg1, %c0_i32, %c0_i32_0, %c0_i32_1 : i32, i32, i32, i32, i32
  }
}

</mosaic_0001>

<llo_original>
// kernel: tpu_custom_call.1
$region0: #{tpu_custom_call.1}
  #allocation0 [shape = 'u32[]', space=smem, size = 0x4, offset = 0x4, fixed_abs, tag = 'smem constant byte address 0x4 - core index']
  #allocation1 [shape = 'u32[144,128]{1,0:T(1,128)}', space=vmem, size = 0x12000, scoped, tag = 'internal scratch']
  %s0 = inlined_call_operand.hbm [shape: f32[2,16,4,128], index: 0, kind: input, shape index: {}]
  %s1 = inlined_call_operand.hbm [shape: f32[2,4,4,4,128], index: 1, kind: output, shape index: {}]
  %s2 = sld [smem:[#allocation0]]
  $region41: #{tpu_custom_call.1} parent=0
    _
  %s4 = ssub.s32 1, %s2
  %s5 = scalar_select 0, %s4, %s2
  $region1: #{tpu_custom_call.1} parent=0
    #allocation2 [shape = 'u8[16384]{0}', space=vmem, size = 0x4000, scoped, tag = 'input window, operand 0']
    #allocation3 [shape = 's32[2]{0}', space=sflag, size = 0x8, scoped, tag = 'scoped memory for tpu_custom_call.1']
    #allocation4 [shape = 's32[2]{0}', space=sflag, size = 0x8, scoped, tag = 'scoped memory for tpu_custom_call.1']
    #allocation5 [shape = 'u8[16384]{0}', space=vmem, size = 0x4000, scoped, tag = 'output window, operand 0']
    %6 = vsyncpa [#allocation3], 0
    %s7 = scalar_lea.sflag [#allocation3], 1
    %8 = vsyncpa %s7, 0
    %9 = vsyncpa [#allocation4], 0
    %s10 = scalar_lea.sflag [#allocation4], 1
    %11 = vsyncpa %s10, 0
    loop: start=0, step=1, limit=10
    $region2: #{tpu_custom_call.1} parent=1 // loop_pre_header
      _
    $region3: #{tpu_custom_call.1} parent=1 // loop_header
      %s13 = sphi 0, %s17
      %p14 = scmp.ge.s32.totalorder %s13, 10
      %s20 = sphi 0, %s32
      %s21 = sphi 0, %s28
      %s22 = sphi 0, %s20
      %s23 = sphi 0, %s21
      %s24 = sphi 0, %s22
      %s25 = sphi 0, %s23
      %s61 = sphi 0, %s63
      %s64 = sphi 0, %s61
      %s65 = sphi 0, %s64
      %s81 = sphi 0, %s65
      %s89 = sphi 0, %s91
      %s92 = sphi 0, %s89
      %s93 = sphi 0, %s92
      %s109 = sphi 0, %s93
    $region4: #{tpu_custom_call.1} parent=1 // loop_header_branch
      %16 = sbr.rel (%p14) target = $region8
    $region5: #{tpu_custom_call.1} parent=1 // loop_body
      %s18 = ssub.s32 %s13, 1
      %s19 = ssub.s32 %s13, 2
      %s26 = sadd.s32 1, %s21
      %p27 = scmp.ge.s32.totalorder %s26, 4
      %s28 = scalar_select %p27, 0, %s26
      %s29 = sadd.s32 1, %s20
      %s30 = scalar_select %p27, %s29, %s20
      %p31 = scmp.ge.s32.totalorder %s30, 2
      %s32 = scalar_select %p31, 0, %s30
      %p33 = scmp.lt.s32.totalorder %s21, 0
      %s34 = ssub.s32 0, %s21
      %s35 = scalar_select %p33, %s34, %s21
      %s36 = sand.u32 %s35, 3
      %s37 = ssub.s32 0, %s36
      %s38 = scalar_select %p33, %s37, %s36
      %p39 = scmp.ne.s32.totalorder %s38, 0
      %p40 = scmp.lt.s32.totalorder %s38, 0
      %p41 = pnand %p40, %p39
      %p42 = pneg %p41
      %s43 = sadd.s32 %s38, 4
      %s44 = scalar_select %p42, %s43, %s38
      %p45 = scmp.lt.s32.totalorder %s28, 0
      %s46 = ssub.s32 0, %s28
      %s47 = scalar_select %p45, %s46, %s28
      %s48 = sand.u32 %s47, 3
      %s49 = ssub.s32 0, %s48
      %s50 = scalar_select %p45, %s49, %s48
      %p51 = scmp.ne.s32.totalorder %s50, 0
      %p52 = scmp.lt.s32.totalorder %s50, 0
      %p53 = pnand %p52, %p51
      %p54 = pneg %p53
      %s55 = sadd.s32 %s50, 4
      %s56 = scalar_select %p54, %s55, %s50
      %s57 = ssub.s32 %s20, %s32
      %s58 = ssub.s32 %s44, %s56
      %s59 = sor.u32 %s57, %s58
      %p60 = scmp.eq.s32.totalorder %s59, 0
      %s62 = sadd.s32 %s61, 1
      %s63 = scalar_select %p60, %s61, %s62
      %p66 = pneg %p60
      %p67 = scmp.eq.s32.totalorder %s13, 7
      %p68 = por %p66, %p67
      %p69 = scmp.ne.s32.totalorder %s61, %s64
      %p70 = scmp.eq.s32.totalorder %s13, 0
      %p71 = por %p69, %p70
      %p72 = scmp.ne.s32.totalorder %s61, %s64
      %p73 = scmp.eq.s32.totalorder %s18, 7
      %p74 = por %p72, %p73
      %p75 = scmp.ne.s32.totalorder %s64, %s65
      %p76 = scmp.eq.s32.totalorder %s18, 0
      %p77 = por %p75, %p76
      %p78 = scmp.ne.s32.totalorder %s64, %s65
      %p79 = scmp.eq.s32.totalorder %s19, 7
      %p80 = por %p78, %p79
      %p82 = scmp.ne.s32.totalorder %s65, %s81
      %p83 = scmp.eq.s32.totalorder %s19, 0
      %p84 = por %p82, %p83
      %s85 = ssub.s32 %s20, %s32
      %s86 = ssub.s32 %s21, %s28
      %s87 = sor.u32 %s85, %s86
      %p88 = scmp.eq.s32.totalorder %s87, 0
      %s90 = sadd.s32 %s89, 1
      %s91 = scalar_select %p88, %s89, %s90
      %p94 = pneg %p88
      %p95 = scmp.eq.s32.totalorder %s13, 7
      %p96 = por %p94, %p95
      %p97 = scmp.ne.s32.totalorder %s89, %s92
      %p98 = scmp.eq.s32.totalorder %s13, 0
      %p99 = por %p97, %p98
      %p100 = scmp.ne.s32.totalorder %s89, %s92
      %p101 = scmp.eq.s32.totalorder %s18, 7
      %p102 = por %p100, %p101
      %p103 = scmp.ne.s32.totalorder %s92, %s93
      %p104 = scmp.eq.s32.totalorder %s18, 0
      %p105 = por %p103, %p104
      %p106 = scmp.ne.s32.totalorder %s92, %s93
      %p107 = scmp.eq.s32.totalorder %s19, 7
      %p108 = por %p106, %p107
      %p110 = scmp.ne.s32.totalorder %s93, %s109
      %p111 = scmp.eq.s32.totalorder %s19, 0
      %p112 = por %p110, %p111
      %p113 = scmp.le.s32.totalorder 1, %s13
      %p114 = scmp.lt.s32.totalorder %s13, 9
      %p115 = pnand %p113, %p114
      %p116 = pneg %p115
      // Predicated region
      $region9: #{tpu_custom_call.1} parent=5 // pred_check
        _
      $region10: #{tpu_custom_call.1} parent=5 // pred_check_branch
        %118 = sbr.rel (%p115) target = $region12
      $region11: #{tpu_custom_call.1} parent=5 // pred_region
        %s119 = ssub.s32 %s13, 1
      $region12: #{tpu_custom_call.1} parent=5 // pred_fallthru
        _
      %p120 = scmp.lt.s32.totalorder %s13, 8
      // Predicated region
      $region13: #{tpu_custom_call.1} parent=5 // pred_check
        %p121 = pneg %p120
      $region14: #{tpu_custom_call.1} parent=5 // pred_check_branch
        %123 = sbr.rel (%p121) target = $region16
      $region15: #{tpu_custom_call.1} parent=5 // pred_region
        // Predicated region
        $region17: #{tpu_custom_call.1} parent=15 // pred_check
          %p124 = pneg %p71
        $region18: #{tpu_custom_call.1} parent=15 // pred_check_branch
          %126 = sbr.rel (%p124) target = $region20
        $region19: #{tpu_custom_call.1} parent=15 // pred_region
          %s127 = sand.u32 %s61, 1
          %s128 = scalar_lea.sflag [#allocation3], %s127
          %s129 = sand.u32 %s61, 1
          %s130 = smul.addr %s129, 16
          %s131 = scalar_lea.vmem [#allocation2], %s130
          %p132 = scmp.lt.s32.totalorder %s21, 0
          %s133 = ssub.s32 0, %s21
          %s134 = scalar_select %p132, %s133, %s21
          %s135 = sand.u32 %s134, 3
          %s136 = ssub.s32 0, %s135
          %s137 = scalar_select %p132, %s136, %s135
          %p138 = scmp.ne.s32.totalorder %s137, 0
          %p139 = scmp.lt.s32.totalorder %s137, 0
          %p140 = pnand %p139, %p138
          %p141 = pneg %p140
          %s142 = sadd.s32 %s137, 4
          %s143 = scalar_select %p141, %s142, %s137
          %s144 = smul.u32 4, %s143
          %s146 = ssub.s32 256, 256
          %147 = vsyncadd %s128, %s146
          %s148 = smul.addr %s20, 16
          %s149 = sadd.s32 %s144, %s148
          %s150 = smul.addr %s149, 64
          %s151 = scalar_lea.hbm %s0, %s150
          %s152 = sshll.u32 %s131, 4
          %s153 = int_to_ptr.vmem [resolvable:$true] %s152
          %158 = dma.hbm_to_vmem [thread:$0]  %s151, 256, %s153, %s128, 64, 64, 4
        $region20: #{tpu_custom_call.1} parent=15 // pred_fallthru
          _
      $region16: #{tpu_custom_call.1} parent=5 // pred_fallthru
        _
      %p159 = scmp.le.s32.totalorder 1, %s13
      %p160 = scmp.lt.s32.totalorder %s13, 9
      %p161 = pnand %p159, %p160
      %p162 = pneg %p161
      // Predicated region
      $region21: #{tpu_custom_call.1} parent=5 // pred_check
        _
      $region22: #{tpu_custom_call.1} parent=5 // pred_check_branch
        %164 = sbr.rel (%p161) target = $region24
      $region23: #{tpu_custom_call.1} parent=5 // pred_region
        %s165 = ssub.s32 %s13, 1
        %s166 = sand.u32 %s64, 1
        %s167 = scalar_lea.sflag [#allocation3], %s166
        %s168 = sand.u32 %s64, 1
        %s169 = smul.addr %s168, 16
        %s170 = scalar_lea.vmem [#allocation2], %s169
        // Predicated region
        $region25: #{tpu_custom_call.1} parent=23 // pred_check
          %p171 = pneg %p77
        $region26: #{tpu_custom_call.1} parent=23 // pred_check_branch
          %173 = sbr.rel (%p171) target = $region28
        $region27: #{tpu_custom_call.1} parent=23 // pred_region
          %174 = dma.done %s167, 256
        $region28: #{tpu_custom_call.1} parent=23 // pred_fallthru
          _
        %s175 = sand.u32 %s64, 1
        %s176 = scalar_lea.sflag [#allocation3], %s175
        %s177 = sand.u32 %s64, 1
        %s178 = smul.addr %s177, 16
        %s179 = scalar_lea.vmem [#allocation2], %s178
        %p180 = pneg %p77
        %p181 = pneg %p74
        %p182 = pneg %p105
        %p183 = pneg %p102
        %s184 = sand.u32 %s92, 1
        %s185 = scalar_lea.sflag [#allocation4], %s184
        %s186 = sand.u32 %s92, 1
        %s187 = smul.addr %s186, 16
        %s188 = scalar_lea.vmem [#allocation5], %s187
        %p189 = scmp.lt.s32.totalorder %s23, 0
        %s190 = ssub.s32 0, %s23
        %s191 = scalar_select %p189, %s190, %s23
        %s192 = sand.u32 %s191, 3
        %s193 = ssub.s32 0, %s192
        %s194 = scalar_select %p189, %s193, %s192
        %p195 = scmp.ne.s32.totalorder %s194, 0
        %p196 = scmp.lt.s32.totalorder %s194, 0
        %p197 = pnand %p196, %p195
        %p198 = pneg %p197
        %s199 = sadd.s32 %s194, 4
        %s200 = scalar_select %p198, %s199, %s194
        %s201 = smul.u32 4, %s200
        %v202 = vld [vmem:[%s170] sm:$0xf]
        %v205 = vunpack.c.l.s4 1966171168
        %v206 = vunpack.c.0.s8 %v205
        %v207 = vlaneseq
        %v208 = vshrl.u32 %v207, 7
        %v209 = vsub.s32 %v206, %v208
        %v210 = vrot.slane %v202, %v209
        %v211 = vcombine.high %v210, %v210
        %v213 = vunpack.c.l.s4 1966171168
        %v214 = vunpack.c.0.s8 %v213
        %v215 = vlaneseq
        %v216 = vshrl.u32 %v215, 7
        %v217 = vsub.s32 %v214, %v216
        %v218 = vrot.slane %v210, %v217
        %v220 = vunpack.c.l.s4 1966171168
        %v221 = vunpack.c.0.s8 %v220
        %v222 = vlaneseq
        %v223 = vshrl.u32 %v222, 7
        %v224 = vsub.s32 %v221, %v223
        %v225 = vrot.slane %v211, %v224
        %v226 = vcombine.high %v218, %v218
        %v227 = vcombine.high %v225, %v225
        %232 = vst [vmem:[%s188] sm:$0x1] %v218
        %233 = vst [vmem:[%s188 + $0x4] sm:$0x1] %v225
        %234 = vst [vmem:[%s188 + $0x8] sm:$0x1] %v226
        %235 = vst [vmem:[%s188 + $0xc] sm:$0x1] %v227
        %s236 = scalar_lea.vmem %s170, 4 [#allocation2]
        %v237 = vld [vmem:[%s236] sm:$0xf]
        %v240 = vunpack.c.l.s4 1966171168
        %v241 = vunpack.c.0.s8 %v240
        %v242 = vlaneseq
        %v243 = vshrl.u32 %v242, 7
        %v244 = vsub.s32 %v241, %v243
        %v245 = vrot.slane %v237, %v244
        %v246 = vcombine.high %v245, %v245
        %v248 = vunpack.c.l.s4 1966171168
        %v249 = vunpack.c.0.s8 %v248
        %v250 = vlaneseq
        %v251 = vshrl.u32 %v250, 7
        %v252 = vsub.s32 %v249, %v251
        %v253 = vrot.slane %v245, %v252
        %v255 = vunpack.c.l.s4 1966171168
        %v256 = vunpack.c.0.s8 %v255
        %v257 = vlaneseq
        %v258 = vshrl.u32 %v257, 7
        %v259 = vsub.s32 %v256, %v258
        %v260 = vrot.slane %v246, %v259
        %v261 = vcombine.high %v253, %v253
        %v262 = vcombine.high %v260, %v260
        %267 = vst [vmem:[%s188 + $0x1] sm:$0x1] %v253
        %268 = vst [vmem:[%s188 + $0x5] sm:$0x1] %v260
        %269 = vst [vmem:[%s188 + $0x9] sm:$0x1] %v261
        %270 = vst [vmem:[%s188 + $0xd] sm:$0x1] %v262
        %s271 = scalar_lea.vmem %s170, 8 [#allocation2]
        %v272 = vld [vmem:[%s271] sm:$0xf]
        %v275 = vunpack.c.l.s4 1966171168
        %v276 = vunpack.c.0.s8 %v275
        %v277 = vlaneseq
        %v278 = vshrl.u32 %v277, 7
        %v279 = vsub.s32 %v276, %v278
        %v280 = vrot.slane %v272, %v279
        %v281 = vcombine.high %v280, %v280
        %v283 = vunpack.c.l.s4 1966171168
        %v284 = vunpack.c.0.s8 %v283
        %v285 = vlaneseq
        %v286 = vshrl.u32 %v285, 7
        %v287 = vsub.s32 %v284, %v286
        %v288 = vrot.slane %v280, %v287
        %v290 = vunpack.c.l.s4 1966171168
        %v291 = vunpack.c.0.s8 %v290
        %v292 = vlaneseq
        %v293 = vshrl.u32 %v292, 7
        %v294 = vsub.s32 %v291, %v293
        %v295 = vrot.slane %v281, %v294
        %v296 = vcombine.high %v288, %v288
        %v297 = vcombine.high %v295, %v295
        %302 = vst [vmem:[%s188 + $0x2] sm:$0x1] %v288
        %303 = vst [vmem:[%s188 + $0x6] sm:$0x1] %v295
        %304 = vst [vmem:[%s188 + $0xa] sm:$0x1] %v296
        %305 = vst [vmem:[%s188 + $0xe] sm:$0x1] %v297
        %s306 = scalar_lea.vmem %s170, 12 [#allocation2]
        %v307 = vld [vmem:[%s306] sm:$0xf]
        %v310 = vunpack.c.l.s4 1966171168
        %v311 = vunpack.c.0.s8 %v310
        %v312 = vlaneseq
        %v313 = vshrl.u32 %v312, 7
        %v314 = vsub.s32 %v311, %v313
        %v315 = vrot.slane %v307, %v314
        %v316 = vcombine.high %v315, %v315
        %v318 = vunpack.c.l.s4 1966171168
        %v319 = vunpack.c.0.s8 %v318
        %v320 = vlaneseq
        %v321 = vshrl.u32 %v320, 7
        %v322 = vsub.s32 %v319, %v321
        %v323 = vrot.slane %v315, %v322
        %v325 = vunpack.c.l.s4 1966171168
        %v326 = vunpack.c.0.s8 %v325
        %v327 = vlaneseq
        %v328 = vshrl.u32 %v327, 7
        %v329 = vsub.s32 %v326, %v328
        %v330 = vrot.slane %v316, %v329
        %v331 = vcombine.high %v323, %v323
        %v332 = vcombine.high %v330, %v330
        %337 = vst [vmem:[%s188 + $0x3] sm:$0x1] %v323
        %338 = vst [vmem:[%s188 + $0x7] sm:$0x1] %v330
        %339 = vst [vmem:[%s188 + $0xb] sm:$0x1] %v331
        %340 = vst [vmem:[%s188 + $0xf] sm:$0x1] %v332
        %s341 = sand.u32 %s92, 1
        %s342 = scalar_lea.sflag [#allocation4], %s341
        %s343 = sand.u32 %s92, 1
        %s344 = smul.addr %s343, 16
        %s345 = scalar_lea.vmem [#allocation5], %s344
        // Predicated region
        $region29: #{tpu_custom_call.1} parent=23 // pred_check
          %p346 = pneg %p102
        $region30: #{tpu_custom_call.1} parent=23 // pred_check_branch
          %348 = sbr.rel (%p346) target = $region32
        $region31: #{tpu_custom_call.1} parent=23 // pred_region
          %s350 = ssub.s32 256, 256
          %351 = vsyncadd %s342, %s350
          %s352 = smul.addr %s23, 4
          %s353 = smul.addr %s22, 16
          %s354 = sadd.s32 %s352, %s353
          %s355 = smul.addr %s354, 64
          %s356 = scalar_lea.hbm %s1, %s355
          %s357 = sshll.u32 %s345, 4
          %s358 = int_to_ptr.vmem [resolvable:$true] %s357
          %363 = dma.vmem_to_hbm [thread:$0]  %s358, 256, %s356, %s342, 64, 64, 4
        $region32: #{tpu_custom_call.1} parent=23 // pred_fallthru
          _
      $region24: #{tpu_custom_call.1} parent=5 // pred_fallthru
        _
      %p364 = scmp.le.s32.totalorder 2, %s13
      // Predicated region
      $region33: #{tpu_custom_call.1} parent=5 // pred_check
        %p365 = pneg %p364
      $region34: #{tpu_custom_call.1} parent=5 // pred_check_branch
        %367 = sbr.rel (%p365) target = $region36
      $region35: #{tpu_custom_call.1} parent=5 // pred_region
        %s368 = ssub.s32 %s13, 2
        // Predicated region
        $region37: #{tpu_custom_call.1} parent=35 // pred_check
          %p369 = pneg %p108
        $region38: #{tpu_custom_call.1} parent=35 // pred_check_branch
          %371 = sbr.rel (%p369) target = $region40
        $region39: #{tpu_custom_call.1} parent=35 // pred_region
          %s372 = sand.u32 %s93, 1
          %s373 = scalar_lea.sflag [#allocation4], %s372
          %s374 = sand.u32 %s93, 1
          %s375 = smul.addr %s374, 16
          %s376 = scalar_lea.vmem [#allocation5], %s375
          %377 = dma.done %s373, 256
        $region40: #{tpu_custom_call.1} parent=35 // pred_fallthru
          _
      $region36: #{tpu_custom_call.1} parent=5 // pred_fallthru
        _
    $region6: #{tpu_custom_call.1} parent=1 // loop_footer
      %s17 = sadd.s32 1, %s13
    $region7: #{tpu_custom_call.1} parent=1 // loop_footer_branch
      %12 = sbr.rel target = $region3
    $region8: #{tpu_custom_call.1} parent=1 // loop_exit
      _
    %378 = vsyncpa [#allocation3], 1
    %s379 = scalar_lea.sflag [#allocation3], 1
    %380 = vsyncpa %s379, 1
    %381 = vsyncpa [#allocation4], 1
    %s382 = scalar_lea.sflag [#allocation4], 1
    %383 = vsyncpa %s382, 1

</llo_original>
